<compile_context>
chip_gen: v5e
topology: v5e:2x2
jax: 0.10.0
libtpu: 0.0.40
codegen_flags: <defaults>
</compile_context>

<pallas_src>
import jax
import jax.numpy as jnp
from jax.experimental import pallas as pl
from jax.experimental.pallas import tpu as pltpu


def _corner_add_kernel(x_ref, p_ref, o_ref):
    # x_ref/o_ref: (tb, C, tr, W); p_ref: (1, C, tr, W) broadcast over the batch tile.
    o_ref[...] = x_ref[...] + p_ref[...]


def fixed_patch_prompter(x, patch, *, vmem_budget_bytes=12 * 1024 * 1024):
    """x: [B, C, H, W]; patch: [1, C, P, P] -> [B, C, H, W] (x + zero-padded patch)."""
    B, C, H, W = x.shape
    _, Cp, P, P2 = patch.shape
    assert C == Cp and P == P2 and P <= H and P <= W

    itemsize = jnp.dtype(x.dtype).itemsize
    # Dtype-aware sublane quantum: f32 -> 8, bf16 -> 16, int8/fp8 -> 32 rows.
    q = 8 * max(1, 4 // itemsize)
    # Rows actually touched: patch rows rounded up to the sublane quantum,
    # clamped to H (block dim == full extent is always legal).
    rows_cover = min(((P + q - 1) // q) * q, H)

    def block_bytes(tb, tr):
        return tb * C * tr * W * itemsize

    def prompt_bytes(tr):
        return C * tr * W * itemsize

    # --- pick the row tile (tr): full corner block unless it blows the budget.
    if rows_cover == H:
        tr = H
    else:
        tr = rows_cover
        while tr > q and (rows_cover % tr != 0 or
                          4 * block_bytes(1, tr) + 2 * prompt_bytes(tr) > vmem_budget_bytes):
            tr -= q
        tr = max(q, tr)

    # --- pick the batch tile (tb): x + out double-buffered (4x) + prompt (2x),
    # rounded DOWN so the budget is actually respected.
    avail = max(vmem_budget_bytes - 2 * prompt_bytes(tr), 4 * block_bytes(1, tr))
    tb = max(1, int(avail) // int(4 * block_bytes(1, tr)))
    tb = min(tb, B)
    # v7x megacore: guarantee >= 2 steps along the parallel batch axis.
    if B >= 2 and pl.cdiv(B, tb) < 2:
        tb = (B + 1) // 2

    n_row_blocks = max(1, rows_cover // tr)
    grid = (pl.cdiv(B, tb), n_row_blocks)

    # Tiny one-time prep: zero-padded prompt covering only the touched rows
    # (C * rows_cover * W elements, e.g. ~21K floats at 224^2 / P=30).
    prompt = jnp.zeros((1, C, rows_cover, W), x.dtype).at[:, :, :P, :P].set(
        patch.astype(x.dtype))

    out = pl.pallas_call(
        _corner_add_kernel,
        out_shape=jax.ShapeDtypeStruct((B, C, H, W), x.dtype),
        grid_spec=pltpu.PrefetchScalarGridSpec(
            num_scalar_prefetch=0,
            grid=grid,
            in_specs=[
                # x: only the patch-row blocks are ever indexed (row block r < rows_cover/tr).
                pl.BlockSpec((tb, C, tr, W), lambda i, r: (i, 0, r, 0)),
                # prompt: constant batch block index -> stays resident, tiny anyway.
                pl.BlockSpec((1, C, tr, W), lambda i, r: (0, 0, r, 0)),
            ],
            out_specs=pl.BlockSpec((tb, C, tr, W), lambda i, r: (i, 0, r, 0)),
        ),
        # Alias x -> out: regions outside the patch rows are never touched by the
        # grid and keep their (copied or donated) x values.
        input_output_aliases={0: 0},
        compiler_params=pltpu.CompilerParams(
            dimension_semantics=("parallel", "parallel")),
    )(x, prompt)
    return out


if __name__ == "__main__":
    # Small shapes consistent with the module: image_size=16, prompt_size=8.
    B, C, ISIZE, PSIZE = 2, 3, 16, 8

    key = jax.random.PRNGKey(0)
    kx, kp = jax.random.split(key)
    x = jax.random.normal(kx, (B, C, ISIZE, ISIZE), dtype=jnp.float32)
    # nn.Parameter(torch.randn([1, 3, psize, psize])) -> deterministic normal init.
    patch = jax.random.normal(kp, (1, C, PSIZE, PSIZE), dtype=jnp.float32)

    # Reference computed BEFORE the kernel call (the kernel may alias/donate x
    # when the surrounding computation allows it).
    prompt_full = jnp.zeros((1, C, ISIZE, ISIZE), x.dtype).at[:, :, :PSIZE, :PSIZE].set(patch)
    ref = jax.block_until_ready(x + prompt_full)

    out = fixed_patch_prompter(x, patch)
    out = jax.block_until_ready(out)

    assert out.shape == x.shape and out.dtype == x.dtype
    assert jnp.allclose(out, ref, atol=1e-6, rtol=1e-6)
    print("KERNEL_OK")
</pallas_src>

<mosaic_0001>
module attributes {stable_mosaic.version = 11 : i64} {
  func.func @_corner_add_kernel(%arg0: i32, %arg1: i32, %arg2: memref<1x3x8x16xf32, #tpu.memory_space<vmem>>, %arg3: memref<1x3x8x16xf32, #tpu.memory_space<vmem>>, %arg4: memref<1x3x8x16xf32, #tpu.memory_space<vmem>>) attributes {dimension_semantics = [#tpu.dimension_semantics<parallel>, #tpu.dimension_semantics<parallel>], iteration_bounds = array<i64: 2, 1>, scalar_prefetch = 0 : i64, scratch_operands = 0 : i64, tpu.core_type = #tpu.core_type<tc>, window_params = [{transform_indices = @transform_0, window_bounds = array<i64: 1, 3, 8, 16>}, {transform_indices = @transform_1, window_bounds = array<i64: 1, 3, 8, 16>}, {transform_indices = @transform_2, window_bounds = array<i64: 1, 3, 8, 16>}]} {
    %c0 = arith.constant 0 : index
    %c0_0 = arith.constant 0 : index
    %c0_1 = arith.constant 0 : index
    %c0_2 = arith.constant 0 : index
    %0 = vector.load %arg2[%c0, %c0_0, %c0_1, %c0_2] : memref<1x3x8x16xf32, #tpu.memory_space<vmem>>, vector<1x3x8x16xf32>
    %c0_3 = arith.constant 0 : index
    %c0_4 = arith.constant 0 : index
    %c0_5 = arith.constant 0 : index
    %c0_6 = arith.constant 0 : index
    %1 = vector.load %arg3[%c0_3, %c0_4, %c0_5, %c0_6] : memref<1x3x8x16xf32, #tpu.memory_space<vmem>>, vector<1x3x8x16xf32>
    %2 = arith.addf %0, %1 : vector<1x3x8x16xf32>
    %c0_7 = arith.constant 0 : index
    %c0_8 = arith.constant 0 : index
    %c0_9 = arith.constant 0 : index
    %c0_10 = arith.constant 0 : index
    %3 = vector.load %arg4[%c0_7, %c0_8, %c0_9, %c0_10] : memref<1x3x8x16xf32, #tpu.memory_space<vmem>>, vector<1x3x8x16xf32>
    tpu.vector_store %arg4[%c0_7, %c0_8, %c0_9, %c0_10], %2 {strides = array<i32>} : memref<1x3x8x16xf32, #tpu.memory_space<vmem>>, vector<1x3x8x16xf32>,
    return
  }
  func.func @transform_0(%arg0: i32, %arg1: i32) -> (i32, i32, i32, i32) {
    %c0_i32 = arith.constant 0 : i32
    %c0_i32_0 = arith.constant 0 : i32
    %c0_i32_1 = arith.constant 0 : i32
    return %arg0, %c0_i32, %arg1, %c0_i32_0 : i32, i32, i32, i32
  }
  func.func @transform_1(%arg0: i32, %arg1: i32) -> (i32, i32, i32, i32) {
    %c0_i32 = arith.constant 0 : i32
    %c0_i32_0 = arith.constant 0 : i32
    %c0_i32_1 = arith.constant 0 : i32
    %c0_i32_2 = arith.constant 0 : i32
    return %c0_i32, %c0_i32_0, %arg1, %c0_i32_1 : i32, i32, i32, i32
  }
  func.func @transform_2(%arg0: i32, %arg1: i32) -> (i32, i32, i32, i32) {
    %c0_i32 = arith.constant 0 : i32
    %c0_i32_0 = arith.constant 0 : i32
    %c0_i32_1 = arith.constant 0 : i32
    return %arg0, %c0_i32, %arg1, %c0_i32_0 : i32, i32, i32, i32
  }
}

</mosaic_0001>

<llo_original>
// kernel: tpu_custom_call.1
$region0: #{tpu_custom_call.1}
  #allocation0 [shape = 'u32[]', space=smem, size = 0x4, offset = 0x4, fixed_abs, tag = 'smem constant byte address 0x4 - core index']
  #allocation1 [shape = 'u32[72,128]{1,0:T(1,128)}', space=vmem, size = 0x9000, scoped, tag = 'internal scratch']
  %s0 = inlined_call_operand.hbm [shape: f32[2,3,16,16], index: 0, kind: input, shape index: {}, may-alias: {0,2}]
  %s1 = inlined_call_operand.vmem [shape: f32[1,3,8,16], index: 1, kind: input, shape index: {}]
  %s2 = inlined_call_operand.hbm [shape: f32[2,3,16,16], index: 2, kind: output, shape index: {}, may-alias: {0,2}]
  %s3 = sld [smem:[#allocation0]]
  $region45: #{tpu_custom_call.1} parent=0
    _
  %s5 = ssub.s32 1, %s3
  %s6 = scalar_select 0, %s5, %s3
  $region1: #{tpu_custom_call.1} parent=0
    #allocation2 [shape = 'u8[24576]{0}', space=vmem, size = 0x6000, scoped, tag = 'input window, operand 0']
    #allocation3 [shape = 's32[2]{0}', space=sflag, size = 0x8, scoped, tag = 'scoped memory for tpu_custom_call.1']
    #allocation4 [shape = 's32[2]{0}', space=sflag, size = 0x8, scoped, tag = 'scoped memory for tpu_custom_call.1']
    #allocation5 [shape = 'u8[24576]{0}', space=vmem, size = 0x6000, scoped, tag = 'output window, operand 0']
    %7 = vsyncpa [#allocation3], 0
    %s8 = scalar_lea.sflag [#allocation3], 1
    %9 = vsyncpa %s8, 0
    %10 = vsyncpa [#allocation4], 0
    %s11 = scalar_lea.sflag [#allocation4], 1
    %12 = vsyncpa %s11, 0
    loop: start=0, step=1, limit=4
    $region2: #{tpu_custom_call.1} parent=1 // loop_pre_header
      _
    $region3: #{tpu_custom_call.1} parent=1 // loop_header
      %s14 = sphi 0, %s18
      %p15 = scmp.ge.s32.totalorder %s14, 4
      %s21 = sphi 0, %s33
      %s22 = sphi 0, %s29
      %s23 = sphi 0, %s21
      %s24 = sphi 0, %s22
      %s25 = sphi 0, %s23
      %s26 = sphi 0, %s24
      %s38 = sphi 0, %s40
      %s41 = sphi 0, %s38
      %s42 = sphi 0, %s41
      %s58 = sphi 0, %s42
      %s64 = sphi 0, %s66
      %s67 = sphi 0, %s64
      %s68 = sphi 0, %s67
      %s84 = sphi 0, %s68
      %s92 = sphi 0, %s94
      %s95 = sphi 0, %s92
      %s96 = sphi 0, %s95
      %s112 = sphi 0, %s96
    $region4: #{tpu_custom_call.1} parent=1 // loop_header_branch
      %17 = sbr.rel (%p15) target = $region8
    $region5: #{tpu_custom_call.1} parent=1 // loop_body
      %s19 = ssub.s32 %s14, 1
      %s20 = ssub.s32 %s14, 2
      %s27 = sadd.s32 1, %s22
      %p28 = scmp.ge.s32.totalorder %s27, 1
      %s29 = scalar_select %p28, 0, %s27
      %s30 = sadd.s32 1, %s21
      %s31 = scalar_select %p28, %s30, %s21
      %p32 = scmp.ge.s32.totalorder %s31, 2
      %s33 = scalar_select %p32, 0, %s31
      %s34 = ssub.s32 %s21, %s33
      %s35 = ssub.s32 %s22, %s29
      %s36 = sor.u32 %s34, %s35
      %p37 = scmp.eq.s32.totalorder %s36, 0
      %s39 = sadd.s32 %s38, 1
      %s40 = scalar_select %p37, %s38, %s39
      %p43 = pneg %p37
      %p44 = scmp.eq.s32.totalorder %s14, 1
      %p45 = por %p43, %p44
      %p46 = scmp.ne.s32.totalorder %s38, %s41
      %p47 = scmp.eq.s32.totalorder %s14, 0
      %p48 = por %p46, %p47
      %p49 = scmp.ne.s32.totalorder %s38, %s41
      %p50 = scmp.eq.s32.totalorder %s19, 1
      %p51 = por %p49, %p50
      %p52 = scmp.ne.s32.totalorder %s41, %s42
      %p53 = scmp.eq.s32.totalorder %s19, 0
      %p54 = por %p52, %p53
      %p55 = scmp.ne.s32.totalorder %s41, %s42
      %p56 = scmp.eq.s32.totalorder %s20, 1
      %p57 = por %p55, %p56
      %p59 = scmp.ne.s32.totalorder %s42, %s58
      %p60 = scmp.eq.s32.totalorder %s20, 0
      %p61 = por %p59, %p60
      %s62 = ssub.s32 %s22, %s29
      %p63 = scmp.eq.s32.totalorder %s62, 0
      %s65 = sadd.s32 %s64, 1
      %s66 = scalar_select %p63, %s64, %s65
      %p69 = pneg %p63
      %p70 = scmp.eq.s32.totalorder %s14, 1
      %p71 = por %p69, %p70
      %p72 = scmp.ne.s32.totalorder %s64, %s67
      %p73 = scmp.eq.s32.totalorder %s14, 0
      %p74 = por %p72, %p73
      %p75 = scmp.ne.s32.totalorder %s64, %s67
      %p76 = scmp.eq.s32.totalorder %s19, 1
      %p77 = por %p75, %p76
      %p78 = scmp.ne.s32.totalorder %s67, %s68
      %p79 = scmp.eq.s32.totalorder %s19, 0
      %p80 = por %p78, %p79
      %p81 = scmp.ne.s32.totalorder %s67, %s68
      %p82 = scmp.eq.s32.totalorder %s20, 1
      %p83 = por %p81, %p82
      %p85 = scmp.ne.s32.totalorder %s68, %s84
      %p86 = scmp.eq.s32.totalorder %s20, 0
      %p87 = por %p85, %p86
      %s88 = ssub.s32 %s21, %s33
      %s89 = ssub.s32 %s22, %s29
      %s90 = sor.u32 %s88, %s89
      %p91 = scmp.eq.s32.totalorder %s90, 0
      %s93 = sadd.s32 %s92, 1
      %s94 = scalar_select %p91, %s92, %s93
      %p97 = pneg %p91
      %p98 = scmp.eq.s32.totalorder %s14, 1
      %p99 = por %p97, %p98
      %p100 = scmp.ne.s32.totalorder %s92, %s95
      %p101 = scmp.eq.s32.totalorder %s14, 0
      %p102 = por %p100, %p101
      %p103 = scmp.ne.s32.totalorder %s92, %s95
      %p104 = scmp.eq.s32.totalorder %s19, 1
      %p105 = por %p103, %p104
      %p106 = scmp.ne.s32.totalorder %s95, %s96
      %p107 = scmp.eq.s32.totalorder %s19, 0
      %p108 = por %p106, %p107
      %p109 = scmp.ne.s32.totalorder %s95, %s96
      %p110 = scmp.eq.s32.totalorder %s20, 1
      %p111 = por %p109, %p110
      %p113 = scmp.ne.s32.totalorder %s96, %s112
      %p114 = scmp.eq.s32.totalorder %s20, 0
      %p115 = por %p113, %p114
      %p116 = scmp.le.s32.totalorder 1, %s14
      %p117 = scmp.lt.s32.totalorder %s14, 3
      %p118 = pnand %p116, %p117
      %p119 = pneg %p118
      // Predicated region
      $region9: #{tpu_custom_call.1} parent=5 // pred_check
        _
      $region10: #{tpu_custom_call.1} parent=5 // pred_check_branch
        %121 = sbr.rel (%p118) target = $region12
      $region11: #{tpu_custom_call.1} parent=5 // pred_region
        %s122 = ssub.s32 %s14, 1
        // Predicated region
        $region13: #{tpu_custom_call.1} parent=11 // pred_check
          %p123 = pneg %p80
        $region14: #{tpu_custom_call.1} parent=11 // pred_check_branch
          %125 = sbr.rel (%p123) target = $region16
        $region15: #{tpu_custom_call.1} parent=11 // pred_region
          %p126 = scmp.lt.s32.totalorder %s24, 0
          %s127 = scalar_select %p126, %s24, 0
          %s128 = smul.addr %s127, 8
          %s129 = scalar_lea.vmem %s1, %s128
        $region16: #{tpu_custom_call.1} parent=11 // pred_fallthru
          _
      $region12: #{tpu_custom_call.1} parent=5 // pred_fallthru
        _
      %p130 = scmp.lt.s32.totalorder %s14, 2
      // Predicated region
      $region17: #{tpu_custom_call.1} parent=5 // pred_check
        %p131 = pneg %p130
      $region18: #{tpu_custom_call.1} parent=5 // pred_check_branch
        %133 = sbr.rel (%p131) target = $region20
      $region19: #{tpu_custom_call.1} parent=5 // pred_region
        // Predicated region
        $region21: #{tpu_custom_call.1} parent=19 // pred_check
          %p134 = pneg %p48
        $region22: #{tpu_custom_call.1} parent=19 // pred_check_branch
          %136 = sbr.rel (%p134) target = $region24
        $region23: #{tpu_custom_call.1} parent=19 // pred_region
          %s137 = sand.u32 %s38, 1
          %s138 = scalar_lea.sflag [#allocation3], %s137
          %s139 = sand.u32 %s38, 1
          %s140 = smul.addr %s139, 24
          %s141 = scalar_lea.vmem [#allocation2], %s140
          %143 = vsyncadd %s138, 0
          %s144 = smul.addr %s21, 6
          %s145 = sadd.s32 %s22, %s144
          %s146 = smul.addr %s145, 8
          %s147 = scalar_lea.hbm %s0, %s146
          %s148 = sshll.u32 %s147, 4
          %s149 = int_to_ptr.hbm [resolvable:$true] %s148
          %s150 = sshll.u32 %s141, 4
          %s151 = int_to_ptr.vmem [resolvable:$true] %s150
          %156 = dma.hbm_to_vmem [thread:$0]  %s149, 384, %s151, %s138, 256, 128, 8
        $region24: #{tpu_custom_call.1} parent=19 // pred_fallthru
          _
      $region20: #{tpu_custom_call.1} parent=5 // pred_fallthru
        _
      %p157 = scmp.le.s32.totalorder 1, %s14
      %p158 = scmp.lt.s32.totalorder %s14, 3
      %p159 = pnand %p157, %p158
      %p160 = pneg %p159
      // Predicated region
      $region25: #{tpu_custom_call.1} parent=5 // pred_check
        _
      $region26: #{tpu_custom_call.1} parent=5 // pred_check_branch
        %162 = sbr.rel (%p159) target = $region28
      $region27: #{tpu_custom_call.1} parent=5 // pred_region
        %s163 = ssub.s32 %s14, 1
        %s164 = sand.u32 %s41, 1
        %s165 = scalar_lea.sflag [#allocation3], %s164
        %s166 = sand.u32 %s41, 1
        %s167 = smul.addr %s166, 24
        %s168 = scalar_lea.vmem [#allocation2], %s167
        // Predicated region
        $region29: #{tpu_custom_call.1} parent=27 // pred_check
          %p169 = pneg %p54
        $region30: #{tpu_custom_call.1} parent=27 // pred_check_branch
          %171 = sbr.rel (%p169) target = $region32
        $region31: #{tpu_custom_call.1} parent=27 // pred_region
          %173 = dma.done %s165, 384
        $region32: #{tpu_custom_call.1} parent=27 // pred_fallthru
          _
        %s174 = sand.u32 %s41, 1
        %s175 = scalar_lea.sflag [#allocation3], %s174
        %s176 = sand.u32 %s41, 1
        %s177 = smul.addr %s176, 24
        %s178 = scalar_lea.vmem [#allocation2], %s177
        %p179 = pneg %p54
        %p180 = pneg %p51
        %p181 = scmp.lt.s32.totalorder %s24, 0
        %s182 = scalar_select %p181, %s24, 0
        %s183 = smul.addr %s182, 8
        %s184 = scalar_lea.vmem %s1, %s183
        %p185 = pneg %p80
        %p186 = pneg %p77
        %p187 = pneg %p108
        %p188 = pneg %p105
        %s189 = sand.u32 %s95, 1
        %s190 = scalar_lea.sflag [#allocation4], %s189
        %s191 = sand.u32 %s95, 1
        %s192 = smul.addr %s191, 24
        %s193 = scalar_lea.vmem [#allocation5], %s192
        %p194 = scmp.lt.s32.totalorder %s24, 0
        %s195 = scalar_select %p194, %s24, 0
        %s196 = smul.addr %s195, 8
        %s197 = scalar_lea.vmem %s1, %s196
        %v198 = vld [vmem:[%s168] sm:$0xff]
        %v199 = vld [vmem:[%s168 + $0x8] sm:$0xff]
        %v200 = vld [vmem:[%s168 + $0x10] sm:$0xff]
        %v201 = vld [vmem:[%s197] sm:$0xff]
        %v202 = vld [vmem:[%s197 + $0x8] sm:$0xff]
        %v203 = vld [vmem:[%s197 + $0x10] sm:$0xff]
        %v204 = vadd.f32 %v198, %v201
        %v205 = vadd.f32 %v199, %v202
        %v206 = vadd.f32 %v200, %v203
        %vm207 = vcmask 130048
        %208 = vst.msk [vmem:[%s193] sm:$0xff] %vm207, %v204
        %209 = vst.msk [vmem:[%s193 + $0x8] sm:$0xff] %vm207, %v205
        %210 = vst.msk [vmem:[%s193 + $0x10] sm:$0xff] %vm207, %v206
        %s211 = sand.u32 %s95, 1
        %s212 = scalar_lea.sflag [#allocation4], %s211
        %s213 = sand.u32 %s95, 1
        %s214 = smul.addr %s213, 24
        %s215 = scalar_lea.vmem [#allocation5], %s214
        // Predicated region
        $region33: #{tpu_custom_call.1} parent=27 // pred_check
          %p216 = pneg %p105
        $region34: #{tpu_custom_call.1} parent=27 // pred_check_branch
          %218 = sbr.rel (%p216) target = $region36
        $region35: #{tpu_custom_call.1} parent=27 // pred_region
          %220 = vsyncadd %s212, 0
          %s221 = smul.addr %s23, 6
          %s222 = sadd.s32 %s24, %s221
          %s223 = smul.addr %s222, 8
          %s224 = scalar_lea.hbm %s2, %s223
          %s225 = sshll.u32 %s215, 4
          %s226 = int_to_ptr.vmem [resolvable:$true] %s225
          %s227 = sshll.u32 %s224, 4
          %s228 = int_to_ptr.hbm [resolvable:$true] %s227
          %233 = dma.vmem_to_hbm [thread:$0]  %s226, 384, %s228, %s212, 128, 256, 8
        $region36: #{tpu_custom_call.1} parent=27 // pred_fallthru
          _
      $region28: #{tpu_custom_call.1} parent=5 // pred_fallthru
        _
      %p234 = scmp.le.s32.totalorder 2, %s14
      // Predicated region
      $region37: #{tpu_custom_call.1} parent=5 // pred_check
        %p235 = pneg %p234
      $region38: #{tpu_custom_call.1} parent=5 // pred_check_branch
        %237 = sbr.rel (%p235) target = $region40
      $region39: #{tpu_custom_call.1} parent=5 // pred_region
        %s238 = ssub.s32 %s14, 2
        // Predicated region
        $region41: #{tpu_custom_call.1} parent=39 // pred_check
          %p239 = pneg %p111
        $region42: #{tpu_custom_call.1} parent=39 // pred_check_branch
          %241 = sbr.rel (%p239) target = $region44
        $region43: #{tpu_custom_call.1} parent=39 // pred_region
          %s242 = sand.u32 %s96, 1
          %s243 = scalar_lea.sflag [#allocation4], %s242
          %s244 = sand.u32 %s96, 1
          %s245 = smul.addr %s244, 24
          %s246 = scalar_lea.vmem [#allocation5], %s245
          %248 = dma.done %s243, 384
        $region44: #{tpu_custom_call.1} parent=39 // pred_fallthru
          _
      $region40: #{tpu_custom_call.1} parent=5 // pred_fallthru
        _
    $region6: #{tpu_custom_call.1} parent=1 // loop_footer
      %s18 = sadd.s32 1, %s14
    $region7: #{tpu_custom_call.1} parent=1 // loop_footer_branch
      %13 = sbr.rel target = $region3
    $region8: #{tpu_custom_call.1} parent=1 // loop_exit
      _
    %249 = vsyncpa [#allocation3], 1
    %s250 = scalar_lea.sflag [#allocation3], 1
    %251 = vsyncpa %s250, 1
    %252 = vsyncpa [#allocation4], 1
    %s253 = scalar_lea.sflag [#allocation4], 1
    %254 = vsyncpa %s253, 1

</llo_original>
